<compile_context>
chip_gen: v5e
topology: v5e:2x2
jax: 0.10.0
libtpu: 0.0.40
codegen_flags: <defaults>
</compile_context>

<pallas_src>
import functools

import jax
import jax.numpy as jnp
from jax.experimental import pallas as pl
from jax.experimental.pallas import tpu as pltpu


def _round_up(n, m):
    return ((n + m - 1) // m) * m


def _mlp_kernel(xt_ref, w1t_ref, b1_ref, w2t_ref, b2_ref, w3_ref, b3_ref, o_ref):
    """One batch tile, entirely in VMEM.

    xt : (F,  Bt)  bf16   (batch on lanes)
    w1t: (H1, F)   bf16   b1: (H1, 1) f32
    w2t: (H2, H1)  bf16   b2: (H2, 1) f32
    w3 : (H2, 1)   f32    b3: (1, 1)  f32
    o  : (1,  Bt)  f32
    """
    # fc1 + relu  (MXU matmul, f32 accumulation)
    h1 = jnp.dot(w1t_ref[...], xt_ref[...], preferred_element_type=jnp.float32)
    h1 = jnp.maximum(h1 + b1_ref[...], 0.0)                      # (H1, Bt) f32

    # fc2 + relu
    h2 = jnp.dot(w2t_ref[...], h1.astype(jnp.bfloat16),
                 preferred_element_type=jnp.float32)
    h2 = jnp.maximum(h2 + b2_ref[...], 0.0)                      # (H2, Bt) f32

    # fc3 (out_features == 1): VPU multiply + sublane reduction; an MXU matmul
    # here would use a single result column and still pay full push/pop cost.
    out = jnp.sum(h2 * w3_ref[...], axis=0, keepdims=True) + b3_ref[...]
    o_ref[...] = out.astype(o_ref.dtype)                         # (1, Bt)


@functools.partial(jax.jit, static_argnames=("block_b",))
def mlp_regressor_forward(x, w1, b1, w2, b2, w3, b3, *, block_b=512):
    """Pallas forward pass of MLPRegressor.

    x:  [B, n_features] f32 (same layout as torch.nn.Linear input)
    w1: [n_features, 64]  b1: [1, 64]
    w2: [64, 64]          b2: [1, 64]
    w3: [64, 1]           b3: [1, 1]
    returns [B, 1] f32
    """
    B, F = x.shape
    H1 = w1.shape[1]
    H2 = w2.shape[1]

    # --- static tile-size selection ---------------------------------------
    # Large batch tiles amortize per-grid-step overhead; cap at ~half the batch
    # (rounded to a lane multiple) and force >= 2 grid steps so v7x's two
    # TensorCores both get work even for small batches.
    block_b = _round_up(max(1, min(block_b, pl.cdiv(B, 2))), 128)
    num_blocks = max(2, pl.cdiv(B, block_b))
    b_pad = num_blocks * block_b

    # --- layout plumbing (outside the kernel) ------------------------------
    # Batch goes on the lane axis; matmul operands are pre-cast to bf16 so the
    # MXU runs native bf16 passes and HBM traffic for x halves.
    xt = jnp.pad(x.T.astype(jnp.bfloat16), ((0, 0), (0, b_pad - B)))
    w1t = w1.T.astype(jnp.bfloat16)                    # (H1, F)
    w2t = w2.T.astype(jnp.bfloat16)                    # (H2, H1)
    b1c = b1.reshape(H1, 1).astype(jnp.float32)
    b2c = b2.reshape(H2, 1).astype(jnp.float32)
    w3c = w3.reshape(H2, 1).astype(jnp.float32)
    b3c = b3.reshape(1, 1).astype(jnp.float32)

    # Constant block index -> weights/biases stay VMEM-resident (no per-step
    # re-DMA of the ~5 KB of parameters).
    resident = lambda shape: pl.BlockSpec(shape, lambda i: (0, 0))

    out = pl.pallas_call(
        _mlp_kernel,
        out_shape=jax.ShapeDtypeStruct((1, b_pad), jnp.float32),
        grid_spec=pltpu.PrefetchScalarGridSpec(
            num_scalar_prefetch=0,
            grid=(num_blocks,),
            in_specs=[
                pl.BlockSpec((F, block_b), lambda i: (0, i)),   # x^T batch tile
                resident((H1, F)),    # w1^T
                resident((H1, 1)),    # b1
                resident((H2, H1)),   # w2^T
                resident((H2, 1)),    # b2
                resident((H2, 1)),    # w3
                resident((1, 1)),     # b3
            ],
            out_specs=pl.BlockSpec((1, block_b), lambda i: (0, i)),
        ),
        compiler_params=pltpu.CompilerParams(
            dimension_semantics=("parallel",),
        ),
    )(xt, w1t, b1c, w2t, b2c, w3c, b3c)

    return out[:, :B].T                                 # (B, 1) f32


def init_params(key, n_features):
    """nn.Linear default init: U(-1/sqrt(fan_in), 1/sqrt(fan_in)).

    Weights are stored as [in, out] (transpose of PyTorch's [out, in] storage);
    this only changes storage, not semantics.
    """
    def linear(k, fan_in, fan_out):
        kw, kb = jax.random.split(k)
        bound = 1.0 / jnp.sqrt(jnp.float32(fan_in))
        w = jax.random.uniform(kw, (fan_in, fan_out), jnp.float32, -bound, bound)
        b = jax.random.uniform(kb, (1, fan_out), jnp.float32, -bound, bound)
        return w, b

    k1, k2, k3 = jax.random.split(key, 3)
    w1, b1 = linear(k1, n_features, 64)
    w2, b2 = linear(k2, 64, 64)
    w3, b3 = linear(k3, 64, 1)
    return w1, b1, w2, b2, w3, b3


if __name__ == "__main__":
    key = jax.random.PRNGKey(0)
    k_params, k_x = jax.random.split(key)

    n_features = 16
    batch = 8

    w1, b1, w2, b2, w3, b3 = init_params(k_params, n_features)
    x = jax.random.normal(k_x, (batch, n_features), jnp.float32)

    out = mlp_regressor_forward(x, w1, b1, w2, b2, w3, b3)
    out = jax.block_until_ready(out)
    assert out.shape == (batch, 1)

    # Reference with the same precision policy as the kernel (bf16 MXU inputs,
    # f32 accumulation) -> tight tolerance.
    xb = x.astype(jnp.bfloat16)
    h1 = jnp.maximum(jnp.dot(xb, w1.astype(jnp.bfloat16),
                             preferred_element_type=jnp.float32) + b1, 0.0)
    h2 = jnp.maximum(jnp.dot(h1.astype(jnp.bfloat16), w2.astype(jnp.bfloat16),
                             preferred_element_type=jnp.float32) + b2, 0.0)
    ref_bf = h2 @ w3 + b3
    assert jnp.allclose(out, ref_bf, atol=1e-4, rtol=1e-3)

    # Full-f32 reference (original PyTorch semantics) -> loose tolerance since
    # the kernel feeds bf16 operands to the MXU.
    r = jnp.maximum(x @ w1 + b1, 0.0)
    r = jnp.maximum(r @ w2 + b2, 0.0)
    ref32 = r @ w3 + b3
    assert jnp.allclose(out, ref32, atol=5e-2, rtol=5e-2)

    print("KERNEL_OK")
</pallas_src>

<mosaic_0001>
module attributes {stable_mosaic.version = 11 : i64} {
  func.func @_mlp_kernel(%arg0: i32, %arg1: memref<16x128xbf16, #tpu.memory_space<vmem>>, %arg2: memref<64x16xbf16, #tpu.memory_space<vmem>>, %arg3: memref<64x1xf32, #tpu.memory_space<vmem>>, %arg4: memref<64x64xbf16, #tpu.memory_space<vmem>>, %arg5: memref<64x1xf32, #tpu.memory_space<vmem>>, %arg6: memref<64x1xf32, #tpu.memory_space<vmem>>, %arg7: memref<1x1xf32, #tpu.memory_space<vmem>>, %arg8: memref<1x128xf32, #tpu.memory_space<vmem>>) attributes {dimension_semantics = [#tpu.dimension_semantics<parallel>], iteration_bounds = array<i64: 2>, scalar_prefetch = 0 : i64, scratch_operands = 0 : i64, tpu.core_type = #tpu.core_type<tc>, window_params = [{transform_indices = @transform_0, window_bounds = array<i64: 16, 128>}, {pipeline_mode = #tpu.pipeline_mode<synchronous>, transform_indices = @transform_1, window_bounds = array<i64: 64, 16>}, {pipeline_mode = #tpu.pipeline_mode<synchronous>, transform_indices = @transform_2, window_bounds = array<i64: 64, 1>}, {pipeline_mode = #tpu.pipeline_mode<synchronous>, transform_indices = @transform_3, window_bounds = array<i64: 64, 64>}, {pipeline_mode = #tpu.pipeline_mode<synchronous>, transform_indices = @transform_4, window_bounds = array<i64: 64, 1>}, {pipeline_mode = #tpu.pipeline_mode<synchronous>, transform_indices = @transform_5, window_bounds = array<i64: 64, 1>}, {pipeline_mode = #tpu.pipeline_mode<synchronous>, transform_indices = @transform_6, window_bounds = array<i64: 1, 1>}, {transform_indices = @transform_7, window_bounds = array<i64: 1, 128>}]} {
    %c0 = arith.constant 0 : index
    %c0_0 = arith.constant 0 : index
    %0 = vector.load %arg2[%c0, %c0_0] : memref<64x16xbf16, #tpu.memory_space<vmem>>, vector<64x16xbf16>
    %c0_1 = arith.constant 0 : index
    %c0_2 = arith.constant 0 : index
    %1 = vector.load %arg1[%c0_1, %c0_2] : memref<16x128xbf16, #tpu.memory_space<vmem>>, vector<16x128xbf16>
    %cst = arith.constant dense<0.000000e+00> : vector<64x128xf32>
    %2 = tpu.matmul %0, %1, %cst {dimension_numbers = #tpu.dot_dimension_numbers<[1], [0], [0], [1], [0, 0, 1, 1], [], []>} : vector<64x16xbf16>, vector<16x128xbf16>, vector<64x128xf32> -> vector<64x128xf32>
    %c0_3 = arith.constant 0 : index
    %c0_4 = arith.constant 0 : index
    %3 = vector.load %arg3[%c0_3, %c0_4] : memref<64x1xf32, #tpu.memory_space<vmem>>, vector<64x1xf32>
    %4 = vector.broadcast %3 : vector<64x1xf32> to vector<64x128xf32>
    %5 = arith.addf %2, %4 : vector<64x128xf32>
    %cst_5 = arith.constant 0.000000e+00 : f32
    %6 = vector.broadcast %cst_5 : f32 to vector<64x128xf32>
    %7 = arith.maximumf %5, %6 : vector<64x128xf32>
    %c0_6 = arith.constant 0 : index
    %c0_7 = arith.constant 0 : index
    %8 = vector.load %arg4[%c0_6, %c0_7] : memref<64x64xbf16, #tpu.memory_space<vmem>>, vector<64x64xbf16>
    %9 = arith.truncf %7 : vector<64x128xf32> to vector<64x128xbf16>
    %cst_8 = arith.constant dense<0.000000e+00> : vector<64x128xf32>
    %10 = tpu.matmul %8, %9, %cst_8 {dimension_numbers = #tpu.dot_dimension_numbers<[1], [0], [0], [1], [0, 0, 1, 1], [], []>} : vector<64x64xbf16>, vector<64x128xbf16>, vector<64x128xf32> -> vector<64x128xf32>
    %c0_9 = arith.constant 0 : index
    %c0_10 = arith.constant 0 : index
    %11 = vector.load %arg5[%c0_9, %c0_10] : memref<64x1xf32, #tpu.memory_space<vmem>>, vector<64x1xf32>
    %12 = vector.broadcast %11 : vector<64x1xf32> to vector<64x128xf32>
    %13 = arith.addf %10, %12 : vector<64x128xf32>
    %cst_11 = arith.constant 0.000000e+00 : f32
    %14 = vector.broadcast %cst_11 : f32 to vector<64x128xf32>
    %15 = arith.maximumf %13, %14 : vector<64x128xf32>
    %c0_12 = arith.constant 0 : index
    %c0_13 = arith.constant 0 : index
    %16 = vector.load %arg6[%c0_12, %c0_13] : memref<64x1xf32, #tpu.memory_space<vmem>>, vector<64x1xf32>
    %17 = vector.broadcast %16 : vector<64x1xf32> to vector<64x128xf32>
    %18 = arith.mulf %15, %17 : vector<64x128xf32>
    %cst_14 = arith.constant dense<0.000000e+00> : vector<128xf32>
    %19 = vector.multi_reduction <add>, %18, %cst_14 [0] : vector<64x128xf32> to vector<128xf32>
    %20 = vector.shape_cast %19 : vector<128xf32> to vector<1x128xf32>
    %c0_15 = arith.constant 0 : index
    %c0_16 = arith.constant 0 : index
    %21 = vector.load %arg7[%c0_15, %c0_16] : memref<1x1xf32, #tpu.memory_space<vmem>>, vector<1x1xf32>
    %22 = vector.broadcast %21 : vector<1x1xf32> to vector<1x128xf32>
    %23 = arith.addf %20, %22 : vector<1x128xf32>
    %c0_17 = arith.constant 0 : index
    %c0_18 = arith.constant 0 : index
    %24 = vector.load %arg8[%c0_17, %c0_18] : memref<1x128xf32, #tpu.memory_space<vmem>>, vector<1x128xf32>
    tpu.vector_store %arg8[%c0_17, %c0_18], %23 {strides = array<i32>} : memref<1x128xf32, #tpu.memory_space<vmem>>, vector<1x128xf32>,
    return
  }
  func.func @transform_0(%arg0: i32) -> (i32, i32) {
    %c0_i32 = arith.constant 0 : i32
    %c0_i32_0 = arith.constant 0 : i32
    return %c0_i32, %arg0 : i32, i32
  }
  func.func @transform_1(%arg0: i32) -> (i32, i32) {
    %c0_i32 = arith.constant 0 : i32
    %c0_i32_0 = arith.constant 0 : i32
    %c0_i32_1 = arith.constant 0 : i32
    return %c0_i32, %c0_i32_0 : i32, i32
  }
  func.func @transform_2(%arg0: i32) -> (i32, i32) {
    %c0_i32 = arith.constant 0 : i32
    %c0_i32_0 = arith.constant 0 : i32
    %c0_i32_1 = arith.constant 0 : i32
    return %c0_i32, %c0_i32_0 : i32, i32
  }
  func.func @transform_3(%arg0: i32) -> (i32, i32) {
    %c0_i32 = arith.constant 0 : i32
    %c0_i32_0 = arith.constant 0 : i32
    %c0_i32_1 = arith.constant 0 : i32
    return %c0_i32, %c0_i32_0 : i32, i32
  }
  func.func @transform_4(%arg0: i32) -> (i32, i32) {
    %c0_i32 = arith.constant 0 : i32
    %c0_i32_0 = arith.constant 0 : i32
    %c0_i32_1 = arith.constant 0 : i32
    return %c0_i32, %c0_i32_0 : i32, i32
  }
  func.func @transform_5(%arg0: i32) -> (i32, i32) {
    %c0_i32 = arith.constant 0 : i32
    %c0_i32_0 = arith.constant 0 : i32
    %c0_i32_1 = arith.constant 0 : i32
    return %c0_i32, %c0_i32_0 : i32, i32
  }
  func.func @transform_6(%arg0: i32) -> (i32, i32) {
    %c0_i32 = arith.constant 0 : i32
    %c0_i32_0 = arith.constant 0 : i32
    %c0_i32_1 = arith.constant 0 : i32
    return %c0_i32, %c0_i32_0 : i32, i32
  }
  func.func @transform_7(%arg0: i32) -> (i32, i32) {
    %c0_i32 = arith.constant 0 : i32
    %c0_i32_0 = arith.constant 0 : i32
    return %c0_i32, %arg0 : i32, i32
  }
}

</mosaic_0001>

<llo_original>
// kernel: mlp_regressor_forward.1
$region0: #{mlp_regressor_forward.1}
  #allocation0 [shape = 'u32[]', space=smem, size = 0x4, offset = 0x4, fixed_abs, tag = 'smem constant byte address 0x4 - core index']
  #allocation1 [shape = 'u32[72,128]{1,0:T(1,128)}', space=vmem, size = 0x9000, scoped, tag = 'internal scratch']
  #allocation2 [shape = 'f32[1,1]{1,0:T(1,128)S(1)}', space=vmem, size = 0x200, scoped, tag = 'scoped memory for mlp_regressor_forward.1']
  %s0 = inlined_call_operand.vmem [shape: bf16[16,256], index: 0, kind: input, shape index: {}]
  %s1 = inlined_call_operand.vmem [shape: bf16[64,16], index: 1, kind: input, shape index: {}]
  %s2 = inlined_call_operand.vmem [shape: f32[64,1], index: 2, kind: input, shape index: {}]
  %s3 = inlined_call_operand.vmem [shape: bf16[64,64], index: 3, kind: input, shape index: {}]
  %s4 = inlined_call_operand.vmem [shape: f32[64,1], index: 4, kind: input, shape index: {}]
  %s5 = inlined_call_operand.vmem [shape: f32[64,1], index: 5, kind: input, shape index: {}]
  %s6 = inlined_call_operand.<no memory space> [shape: f32[1,1], index: 6, kind: input, shape index: {}]
  %s7 = inlined_call_operand.vmem [shape: f32[1,256], index: 7, kind: output, shape index: {}]
  %s8 = sld [smem:[#allocation0]]
  $region102: #{mlp_regressor_forward.1} parent=0
    _
  %s10 = ssub.s32 1, %s8
  %s11 = scalar_select 0, %s10, %s8
  %v12 = vstv %s6
  %13 = vst [vmem:[#allocation2] sm:$0x1] %v12
  $region1: #{mlp_regressor_forward.1} parent=0
    #allocation3 [shape = 'u8[8192]{0}', space=vmem, size = 0x2000, scoped, tag = 'input window, operand 0']
    loop: start=0, step=1, limit=4
    $region2: #{mlp_regressor_forward.1} parent=1 // loop_pre_header
      _
    $region3: #{mlp_regressor_forward.1} parent=1 // loop_header
      %s15 = sphi 0, %s19
      %p16 = scmp.ge.s32.totalorder %s15, 4
      %s25 = sphi 0, %s27
      %s28 = sphi 0, %s25
      %s29 = sphi 0, %s28
      %s45 = sphi 0, %s29
      %s49 = sphi 0, %s49
      %s51 = sphi 0, %s49
      %s52 = sphi 0, %s51
      %s66 = sphi 0, %s52
      %s70 = sphi 0, %s70
      %s72 = sphi 0, %s70
      %s73 = sphi 0, %s72
      %s87 = sphi 0, %s73
      %s91 = sphi 0, %s91
      %s93 = sphi 0, %s91
      %s94 = sphi 0, %s93
      %s108 = sphi 0, %s94
      %s112 = sphi 0, %s112
      %s114 = sphi 0, %s112
      %s115 = sphi 0, %s114
      %s129 = sphi 0, %s115
      %s133 = sphi 0, %s133
      %s135 = sphi 0, %s133
      %s136 = sphi 0, %s135
      %s150 = sphi 0, %s136
      %s154 = sphi 0, %s154
      %s156 = sphi 0, %s154
      %s157 = sphi 0, %s156
      %s171 = sphi 0, %s157
      %s177 = sphi 0, %s179
      %s180 = sphi 0, %s177
      %s181 = sphi 0, %s180
      %s197 = sphi 0, %s181
    $region4: #{mlp_regressor_forward.1} parent=1 // loop_header_branch
      %18 = sbr.rel (%p16) target = $region8
    $region5: #{mlp_regressor_forward.1} parent=1 // loop_body
      %s20 = ssub.s32 %s15, 1
      %s21 = ssub.s32 %s15, 2
      %s22 = sadd.s32 %s15, 1
      %s23 = ssub.s32 %s15, %s22
      %p24 = scmp.eq.s32.totalorder %s23, 0
      %s26 = sadd.s32 %s25, 1
      %s27 = scalar_select %p24, %s25, %s26
      %p30 = pneg %p24
      %p31 = scmp.eq.s32.totalorder %s15, 1
      %p32 = por %p30, %p31
      %p33 = scmp.ne.s32.totalorder %s25, %s28
      %p34 = scmp.eq.s32.totalorder %s15, 0
      %p35 = por %p33, %p34
      %p36 = scmp.ne.s32.totalorder %s25, %s28
      %p37 = scmp.eq.s32.totalorder %s20, 1
      %p38 = por %p36, %p37
      %p39 = scmp.ne.s32.totalorder %s28, %s29
      %p40 = scmp.eq.s32.totalorder %s20, 0
      %p41 = por %p39, %p40
      %p42 = scmp.ne.s32.totalorder %s28, %s29
      %p43 = scmp.eq.s32.totalorder %s21, 1
      %p44 = por %p42, %p43
      %p46 = scmp.ne.s32.totalorder %s29, %s45
      %p47 = scmp.eq.s32.totalorder %s21, 0
      %p48 = por %p46, %p47
      %s50 = sadd.s32 %s49, 1
      %p53 = scmp.eq.s32.totalorder %s15, 1
      %p54 = scmp.ne.s32.totalorder %s49, %s51
      %p55 = scmp.eq.s32.totalorder %s15, 0
      %p56 = por %p54, %p55
      %p57 = scmp.ne.s32.totalorder %s49, %s51
      %p58 = scmp.eq.s32.totalorder %s20, 1
      %p59 = por %p57, %p58
      %p60 = scmp.ne.s32.totalorder %s51, %s52
      %p61 = scmp.eq.s32.totalorder %s20, 0
      %p62 = por %p60, %p61
      %p63 = scmp.ne.s32.totalorder %s51, %s52
      %p64 = scmp.eq.s32.totalorder %s21, 1
      %p65 = por %p63, %p64
      %p67 = scmp.ne.s32.totalorder %s52, %s66
      %p68 = scmp.eq.s32.totalorder %s21, 0
      %p69 = por %p67, %p68
      %s71 = sadd.s32 %s70, 1
      %p74 = scmp.eq.s32.totalorder %s15, 1
      %p75 = scmp.ne.s32.totalorder %s70, %s72
      %p76 = scmp.eq.s32.totalorder %s15, 0
      %p77 = por %p75, %p76
      %p78 = scmp.ne.s32.totalorder %s70, %s72
      %p79 = scmp.eq.s32.totalorder %s20, 1
      %p80 = por %p78, %p79
      %p81 = scmp.ne.s32.totalorder %s72, %s73
      %p82 = scmp.eq.s32.totalorder %s20, 0
      %p83 = por %p81, %p82
      %p84 = scmp.ne.s32.totalorder %s72, %s73
      %p85 = scmp.eq.s32.totalorder %s21, 1
      %p86 = por %p84, %p85
      %p88 = scmp.ne.s32.totalorder %s73, %s87
      %p89 = scmp.eq.s32.totalorder %s21, 0
      %p90 = por %p88, %p89
      %s92 = sadd.s32 %s91, 1
      %p95 = scmp.eq.s32.totalorder %s15, 1
      %p96 = scmp.ne.s32.totalorder %s91, %s93
      %p97 = scmp.eq.s32.totalorder %s15, 0
      %p98 = por %p96, %p97
      %p99 = scmp.ne.s32.totalorder %s91, %s93
      %p100 = scmp.eq.s32.totalorder %s20, 1
      %p101 = por %p99, %p100
      %p102 = scmp.ne.s32.totalorder %s93, %s94
      %p103 = scmp.eq.s32.totalorder %s20, 0
      %p104 = por %p102, %p103
      %p105 = scmp.ne.s32.totalorder %s93, %s94
      %p106 = scmp.eq.s32.totalorder %s21, 1
      %p107 = por %p105, %p106
      %p109 = scmp.ne.s32.totalorder %s94, %s108
      %p110 = scmp.eq.s32.totalorder %s21, 0
      %p111 = por %p109, %p110
      %s113 = sadd.s32 %s112, 1
      %p116 = scmp.eq.s32.totalorder %s15, 1
      %p117 = scmp.ne.s32.totalorder %s112, %s114
      %p118 = scmp.eq.s32.totalorder %s15, 0
      %p119 = por %p117, %p118
      %p120 = scmp.ne.s32.totalorder %s112, %s114
      %p121 = scmp.eq.s32.totalorder %s20, 1
      %p122 = por %p120, %p121
      %p123 = scmp.ne.s32.totalorder %s114, %s115
      %p124 = scmp.eq.s32.totalorder %s20, 0
      %p125 = por %p123, %p124
      %p126 = scmp.ne.s32.totalorder %s114, %s115
      %p127 = scmp.eq.s32.totalorder %s21, 1
      %p128 = por %p126, %p127
      %p130 = scmp.ne.s32.totalorder %s115, %s129
      %p131 = scmp.eq.s32.totalorder %s21, 0
      %p132 = por %p130, %p131
      %s134 = sadd.s32 %s133, 1
      %p137 = scmp.eq.s32.totalorder %s15, 1
      %p138 = scmp.ne.s32.totalorder %s133, %s135
      %p139 = scmp.eq.s32.totalorder %s15, 0
      %p140 = por %p138, %p139
      %p141 = scmp.ne.s32.totalorder %s133, %s135
      %p142 = scmp.eq.s32.totalorder %s20, 1
      %p143 = por %p141, %p142
      %p144 = scmp.ne.s32.totalorder %s135, %s136
      %p145 = scmp.eq.s32.totalorder %s20, 0
      %p146 = por %p144, %p145
      %p147 = scmp.ne.s32.totalorder %s135, %s136
      %p148 = scmp.eq.s32.totalorder %s21, 1
      %p149 = por %p147, %p148
      %p151 = scmp.ne.s32.totalorder %s136, %s150
      %p152 = scmp.eq.s32.totalorder %s21, 0
      %p153 = por %p151, %p152
      %s155 = sadd.s32 %s154, 1
      %p158 = scmp.eq.s32.totalorder %s15, 1
      %p159 = scmp.ne.s32.totalorder %s154, %s156
      %p160 = scmp.eq.s32.totalorder %s15, 0
      %p161 = por %p159, %p160
      %p162 = scmp.ne.s32.totalorder %s154, %s156
      %p163 = scmp.eq.s32.totalorder %s20, 1
      %p164 = por %p162, %p163
      %p165 = scmp.ne.s32.totalorder %s156, %s157
      %p166 = scmp.eq.s32.totalorder %s20, 0
      %p167 = por %p165, %p166
      %p168 = scmp.ne.s32.totalorder %s156, %s157
      %p169 = scmp.eq.s32.totalorder %s21, 1
      %p170 = por %p168, %p169
      %p172 = scmp.ne.s32.totalorder %s157, %s171
      %p173 = scmp.eq.s32.totalorder %s21, 0
      %p174 = por %p172, %p173
      %s175 = ssub.s32 %s15, %s22
      %p176 = scmp.eq.s32.totalorder %s175, 0
      %s178 = sadd.s32 %s177, 1
      %s179 = scalar_select %p176, %s177, %s178
      %p182 = pneg %p176
      %p183 = scmp.eq.s32.totalorder %s15, 1
      %p184 = por %p182, %p183
      %p185 = scmp.ne.s32.totalorder %s177, %s180
      %p186 = scmp.eq.s32.totalorder %s15, 0
      %p187 = por %p185, %p186
      %p188 = scmp.ne.s32.totalorder %s177, %s180
      %p189 = scmp.eq.s32.totalorder %s20, 1
      %p190 = por %p188, %p189
      %p191 = scmp.ne.s32.totalorder %s180, %s181
      %p192 = scmp.eq.s32.totalorder %s20, 0
      %p193 = por %p191, %p192
      %p194 = scmp.ne.s32.totalorder %s180, %s181
      %p195 = scmp.eq.s32.totalorder %s21, 1
      %p196 = por %p194, %p195
      %p198 = scmp.ne.s32.totalorder %s181, %s197
      %p199 = scmp.eq.s32.totalorder %s21, 0
      %p200 = por %p198, %p199
      %p201 = scmp.le.s32.totalorder 1, %s15
      %p202 = scmp.lt.s32.totalorder %s15, 3
      %p203 = pnand %p201, %p202
      %p204 = pneg %p203
      // Predicated region
      $region9: #{mlp_regressor_forward.1} parent=5 // pred_check
        _
      $region10: #{mlp_regressor_forward.1} parent=5 // pred_check_branch
        %206 = sbr.rel (%p203) target = $region12
      $region11: #{mlp_regressor_forward.1} parent=5 // pred_region
        %s207 = ssub.s32 %s15, 1
        // Predicated region
        $region13: #{mlp_regressor_forward.1} parent=11 // pred_check
          %p208 = pneg %p62
        $region14: #{mlp_regressor_forward.1} parent=11 // pred_check_branch
          %210 = sbr.rel (%p208) target = $region16
        $region15: #{mlp_regressor_forward.1} parent=11 // pred_region
          _
        $region16: #{mlp_regressor_forward.1} parent=11 // pred_fallthru
          _
        // Predicated region
        $region17: #{mlp_regressor_forward.1} parent=11 // pred_check
          %p211 = pneg %p83
        $region18: #{mlp_regressor_forward.1} parent=11 // pred_check_branch
          %213 = sbr.rel (%p211) target = $region20
        $region19: #{mlp_regressor_forward.1} parent=11 // pred_region
          _
        $region20: #{mlp_regressor_forward.1} parent=11 // pred_fallthru
          _
        // Predicated region
        $region21: #{mlp_regressor_forward.1} parent=11 // pred_check
          %p214 = pneg %p104
        $region22: #{mlp_regressor_forward.1} parent=11 // pred_check_branch
          %216 = sbr.rel (%p214) target = $region24
        $region23: #{mlp_regressor_forward.1} parent=11 // pred_region
          _
        $region24: #{mlp_regressor_forward.1} parent=11 // pred_fallthru
          _
        // Predicated region
        $region25: #{mlp_regressor_forward.1} parent=11 // pred_check
          %p217 = pneg %p125
        $region26: #{mlp_regressor_forward.1} parent=11 // pred_check_branch
          %219 = sbr.rel (%p217) target = $region28
        $region27: #{mlp_regressor_forward.1} parent=11 // pred_region
          _
        $region28: #{mlp_regressor_forward.1} parent=11 // pred_fallthru
          _
        // Predicated region
        $region29: #{mlp_regressor_forward.1} parent=11 // pred_check
          %p220 = pneg %p146
        $region30: #{mlp_regressor_forward.1} parent=11 // pred_check_branch
          %222 = sbr.rel (%p220) target = $region32
        $region31: #{mlp_regressor_forward.1} parent=11 // pred_region
          _
        $region32: #{mlp_regressor_forward.1} parent=11 // pred_fallthru
          _
        // Predicated region
        $region33: #{mlp_regressor_forward.1} parent=11 // pred_check
          %p223 = pneg %p167
        $region34: #{mlp_regressor_forward.1} parent=11 // pred_check_branch
          %225 = sbr.rel (%p223) target = $region36
        $region35: #{mlp_regressor_forward.1} parent=11 // pred_region
          _
        $region36: #{mlp_regressor_forward.1} parent=11 // pred_fallthru
          _
      $region12: #{mlp_regressor_forward.1} parent=5 // pred_fallthru
        _
      %p226 = scmp.lt.s32.totalorder %s15, 2
      // Predicated region
      $region37: #{mlp_regressor_forward.1} parent=5 // pred_check
        %p227 = pneg %p226
      $region38: #{mlp_regressor_forward.1} parent=5 // pred_check_branch
        %229 = sbr.rel (%p227) target = $region40
      $region39: #{mlp_regressor_forward.1} parent=5 // pred_region
        // Predicated region
        $region41: #{mlp_regressor_forward.1} parent=39 // pred_check
          %p230 = pneg %p35
        $region42: #{mlp_regressor_forward.1} parent=39 // pred_check_branch
          %232 = sbr.rel (%p230) target = $region44
        $region43: #{mlp_regressor_forward.1} parent=39 // pred_region
          %s233 = sand.u32 %s25, 1
          %s234 = sand.u32 %s25, 1
          %s235 = smul.addr %s234, 8
          %s236 = scalar_lea.vmem [#allocation3], %s235
          %s237 = smul.addr %s15, 4
          %s238 = scalar_lea.vmem %s0, %s237
          // Predicated region
          $region45: #{mlp_regressor_forward.1} parent=43 // pred_check
            _
          $region46: #{mlp_regressor_forward.1} parent=43 // pred_check_branch
            %240 = sbr.rel (0) target = $region48
          $region47: #{mlp_regressor_forward.1} parent=43 // pred_region
            // Predicated region
            $region49: #{mlp_regressor_forward.1} parent=47 // pred_check
              _
            $region50: #{mlp_regressor_forward.1} parent=47 // pred_check_branch
              %242 = sbr.rel target = $region52
            $region51: #{mlp_regressor_forward.1} parent=47 // pred_region
              // Predicated region
              $region64: #{mlp_regressor_forward.1} parent=51 // pred_check
                _
              $region65: #{mlp_regressor_forward.1} parent=51 // pred_check_branch
                %260 = sbr.rel (0) target = $region67
              $region66: #{mlp_regressor_forward.1} parent=51 // pred_region
                loop: start=0, step=1, limit=1
                $region68: #{mlp_regressor_forward.1} parent=66 // loop_pre_header
                  _
                $region69: #{mlp_regressor_forward.1} parent=66 // loop_header
                  %s262 = sphi 0, %s266
                  %p263 = scmp.ge.s32.totalorder %s262, 1
                  %s267 = sphi %s238, %s238
                  %s268 = sphi %s236, %s236
                $region70: #{mlp_regressor_forward.1} parent=66 // loop_header_branch
                  %265 = sbr.rel (%p263) target = $region74
                $region71: #{mlp_regressor_forward.1} parent=66 // loop_body
                  _
                $region72: #{mlp_regressor_forward.1} parent=66 // loop_footer
                  %s266 = sadd.s32 1, %s262
                $region73: #{mlp_regressor_forward.1} parent=66 // loop_footer_branch
                  %261 = sbr.rel target = $region69
                $region74: #{mlp_regressor_forward.1} parent=66 // loop_exit
                  _
                %s270 = ssub.s32 16, 1
                loop: start=0, step=1, limit=1
                $region75: #{mlp_regressor_forward.1} parent=66 // loop_pre_header
                  _
                $region76: #{mlp_regressor_forward.1} parent=66 // loop_header
                  %s272 = sphi 0, %s276
                  %p273 = scmp.ge.s32.totalorder %s272, 1
                  %s277 = sphi %s238, %s238
                  %s278 = sphi %s236, %s236
                $region77: #{mlp_regressor_forward.1} parent=66 // loop_header_branch
                  %275 = sbr.rel (%p273) target = $region81
                $region78: #{mlp_regressor_forward.1} parent=66 // loop_body
                  %v279 = vld [vmem:[%s277] sm:%s270]
                  %280 = vst [vmem:[%s278] sm:%s270] %v279
                  %v281 = vld [vmem:[%s277 + $0x8] sm:%s270]
                  %282 = vst [vmem:[%s278 + $0x4] sm:%s270] %v281
                $region79: #{mlp_regressor_forward.1} parent=66 // loop_footer
                  %s276 = sadd.s32 1, %s272
                $region80: #{mlp_regressor_forward.1} parent=66 // loop_footer_branch
                  %271 = sbr.rel target = $region76
                $region81: #{mlp_regressor_forward.1} parent=66 // loop_exit
                  _
              $region67: #{mlp_regressor_forward.1} parent=51 // pred_fallthru
                _
            $region52: #{mlp_regressor_forward.1} parent=47 // pred_fallthru
              _
            // Predicated region
            $region53: #{mlp_regressor_forward.1} parent=47 // pred_check
              _
            $region54: #{mlp_regressor_forward.1} parent=47 // pred_check_branch
              %244 = sbr.rel (0) target = $region56
            $region55: #{mlp_regressor_forward.1} parent=47 // pred_region
              %s246 = ssub.s32 16, 1
              loop: start=0, step=1, limit=1
              $region57: #{mlp_regressor_forward.1} parent=55 // loop_pre_header
                _
              $region58: #{mlp_regressor_forward.1} parent=55 // loop_header
                %s248 = sphi 0, %s252
                %p249 = scmp.ge.s32.totalorder %s248, 1
                %s253 = sphi %s238, %s238
                %s254 = sphi %s236, %s236
              $region59: #{mlp_regressor_forward.1} parent=55 // loop_header_branch
                %251 = sbr.rel (%p249) target = $region63
              $region60: #{mlp_regressor_forward.1} parent=55 // loop_body
                %v255 = vld [vmem:[%s253] sm:%s246]
                %256 = vst [vmem:[%s254] sm:%s246] %v255
                %v257 = vld [vmem:[%s253 + $0x8] sm:%s246]
                %258 = vst [vmem:[%s254 + $0x4] sm:%s246] %v257
              $region61: #{mlp_regressor_forward.1} parent=55 // loop_footer
                %s252 = sadd.s32 1, %s248
              $region62: #{mlp_regressor_forward.1} parent=55 // loop_footer_branch
                %247 = sbr.rel target = $region58
              $region63: #{mlp_regressor_forward.1} parent=55 // loop_exit
                _
            $region56: #{mlp_regressor_forward.1} parent=47 // pred_fallthru
              _
          $region48: #{mlp_regressor_forward.1} parent=43 // pred_fallthru
            _
          %283 = vnop
        $region44: #{mlp_regressor_forward.1} parent=39 // pred_fallthru
          _
      $region40: #{mlp_regressor_forward.1} parent=5 // pred_fallthru
        _
      %p284 = scmp.le.s32.totalorder 1, %s15
      %p285 = scmp.lt.s32.totalorder %s15, 3
      %p286 = pnand %p284, %p285
      %p287 = pneg %p286
      // Predicated region
      $region82: #{mlp_regressor_forward.1} parent=5 // pred_check
        _
      $region83: #{mlp_regressor_forward.1} parent=5 // pred_check_branch
        %289 = sbr.rel (%p286) target = $region85
      $region84: #{mlp_regressor_forward.1} parent=5 // pred_region
        %s290 = ssub.s32 %s15, 1
        %s291 = sand.u32 %s28, 1
        %s292 = sand.u32 %s28, 1
        %s293 = smul.addr %s292, 8
        %s294 = scalar_lea.vmem [#allocation3], %s293
        // Predicated region
        $region86: #{mlp_regressor_forward.1} parent=84 // pred_check
          %p295 = pneg %p41
        $region87: #{mlp_regressor_forward.1} parent=84 // pred_check_branch
          %297 = sbr.rel (%p295) target = $region89
        $region88: #{mlp_regressor_forward.1} parent=84 // pred_region
          _
        $region89: #{mlp_regressor_forward.1} parent=84 // pred_fallthru
          _
        %s298 = sand.u32 %s28, 1
        %s299 = sand.u32 %s28, 1
        %s300 = smul.addr %s299, 8
        %s301 = scalar_lea.vmem [#allocation3], %s300
        %p302 = pneg %p41
        %p303 = pneg %p38
        %p304 = pneg %p62
        %p305 = pneg %p59
        %p306 = pneg %p83
        %p307 = pneg %p80
        %p308 = pneg %p104
        %p309 = pneg %p101
        %p310 = pneg %p125
        %p311 = pneg %p122
        %p312 = pneg %p146
        %p313 = pneg %p143
        %p314 = pneg %p167
        %p315 = pneg %p164
        %p316 = pneg %p193
        %p317 = pneg %p190
        %p318 = scmp.lt.s32.totalorder %s20, 1
        %s319 = scalar_select %p318, %s20, 1
        %s320 = scalar_lea.vmem %s7, %s319
        %p321 = scmp.lt.s32.totalorder %s20, 1
        %s322 = scalar_select %p321, %s20, 1
        %s323 = scalar_lea.vmem %s7, %s322
        %v325 = vld [vmem:[%s1] sm:$0xf]
        %v326 = vld [vmem:[%s1 + $0x4] sm:$0xf]
        %v327 = vld [vmem:[%s1 + $0x8] sm:$0xf]
        %v328 = vld [vmem:[%s1 + $0xc] sm:$0xf]
        %v329 = vld [vmem:[%s1 + $0x10] sm:$0xf]
        %v330 = vld [vmem:[%s1 + $0x14] sm:$0xf]
        %v331 = vld [vmem:[%s1 + $0x18] sm:$0xf]
        %v332 = vld [vmem:[%s1 + $0x1c] sm:$0xf]
        %v333 = vld [vmem:[%s294] sm:$0xf]
        %v334 = vld [vmem:[%s294 + $0x4] sm:$0xf]
        %v335 = vld [vmem:[%s2] sm:$0xff]
        %v336 = vld [vmem:[%s2 + $0x8] sm:$0xff]
        %v337 = vld [vmem:[%s2 + $0x10] sm:$0xff]
        %v338 = vld [vmem:[%s2 + $0x18] sm:$0xff]
        %v339 = vld [vmem:[%s2 + $0x20] sm:$0xff]
        %v340 = vld [vmem:[%s2 + $0x28] sm:$0xff]
        %v341 = vld [vmem:[%s2 + $0x30] sm:$0xff]
        %v342 = vld [vmem:[%s2 + $0x38] sm:$0xff]
        %344 = vset.pattern.permute.xlu0 0
        %345 = vperm.xlu0 %344, %v335
        %v346 = vpop.permute.xlu0 %345
        %349 = vset.pattern.permute.xlu0 0
        %350 = vperm.xlu0 %349, %v336
        %v351 = vpop.permute.xlu0 %350
        %354 = vset.pattern.permute.xlu0 0
        %355 = vperm.xlu0 %354, %v337
        %v356 = vpop.permute.xlu0 %355
        %359 = vset.pattern.permute.xlu0 0
        %360 = vperm.xlu0 %359, %v338
        %v361 = vpop.permute.xlu0 %360
        %364 = vset.pattern.permute.xlu0 0
        %365 = vperm.xlu0 %364, %v339
        %v366 = vpop.permute.xlu0 %365
        %369 = vset.pattern.permute.xlu0 0
        %370 = vperm.xlu0 %369, %v340
        %v371 = vpop.permute.xlu0 %370
        %374 = vset.pattern.permute.xlu0 0
        %375 = vperm.xlu0 %374, %v341
        %v376 = vpop.permute.xlu0 %375
        %379 = vset.pattern.permute.xlu0 0
        %380 = vperm.xlu0 %379, %v342
        %v381 = vpop.permute.xlu0 %380
        %v391 = vunpack.c.l.b16 %v325
        %v392 = vunpack.c.l.b16 %v326
        %v393 = vunpack.c.l.b16 %v327
        %v394 = vunpack.c.l.b16 %v328
        %v395 = vunpack.c.l.b16 %v329
        %v396 = vunpack.c.l.b16 %v330
        %v397 = vunpack.c.l.b16 %v331
        %v398 = vunpack.c.l.b16 %v332
        %v399 = vpack.c.b16 %v392, %v391
        %v400 = vpack.c.b16 %v394, %v393
        %v401 = vpack.c.b16 %v396, %v395
        %v402 = vpack.c.b16 %v398, %v397
        %v405 = vunpack.c.l.b16 %v333
        %v406 = vunpack.c.l.b16 %v334
        %v407 = vpack.c.b16 %v406, %v405
        %vm409 = vcmask 130048
        %v411 = vsel %vm409, %v399, 0
        %v414 = vsel %vm409, %v400, 0
        %v417 = vsel %vm409, %v401, 0
        %v420 = vsel %vm409, %v402, 0
        %422 = vmatpush.bf16.msra.mxu0 0
        %423 = vmatpush.bf16.msra.mxu0 0
        %424 = vmatpush.bf16.msra.mxu0 0
        %425 = vmatpush.bf16.msra.mxu0 0
        %426 = vmatpush.bf16.msra.mxu0 0
        %427 = vmatpush.bf16.msra.mxu0 0
        %428 = vmatpush.bf16.msra.mxu0 0
        %429 = vmatpush.bf16.msra.mxu0 %v407
        %430 = vmatmul.bf16.gmra.mxu0 %v411
        %v431 = vpop.f32.mrf.mxu0
        %v432 = vadd.f32 %v346, %v431
        %v433 = vpop.f32.mrf.mxu0
        %v434 = vadd.f32 %v351, %v433
        %435 = vmatmul.bf16.gmra.mxu0 %v414
        %v436 = vpop.f32.mrf.mxu0
        %v437 = vadd.f32 %v356, %v436
        %v438 = vpop.f32.mrf.mxu0
        %v439 = vadd.f32 %v361, %v438
        %440 = vmatmul.bf16.gmra.mxu0 %v417
        %v441 = vpop.f32.mrf.mxu0
        %v442 = vadd.f32 %v366, %v441
        %v443 = vpop.f32.mrf.mxu0
        %v444 = vadd.f32 %v371, %v443
        %445 = vmatmul.bf16.gmra.mxu0 %v420
        %v446 = vpop.f32.mrf.mxu0
        %v447 = vadd.f32 %v376, %v446
        %v448 = vpop.f32.mrf.mxu0
        %v449 = vadd.f32 %v381, %v448
        %450 = vdwg.mxu0
        %v451 = vmax.f32 %v432, 0.0
        %v452 = vmax.f32 %v434, 0.0
        %v453 = vmax.f32 %v437, 0.0
        %v454 = vmax.f32 %v439, 0.0
        %v455 = vmax.f32 %v442, 0.0
        %v456 = vmax.f32 %v444, 0.0
        %v457 = vmax.f32 %v447, 0.0
        %v458 = vmax.f32 %v449, 0.0
        %v459 = vld [vmem:[%s3] sm:$0xf]
        %v460 = vld [vmem:[%s3 + $0x4] sm:$0xf]
        %v461 = vld [vmem:[%s3 + $0x8] sm:$0xf]
        %v462 = vld [vmem:[%s3 + $0xc] sm:$0xf]
        %v463 = vld [vmem:[%s3 + $0x10] sm:$0xf]
        %v464 = vld [vmem:[%s3 + $0x14] sm:$0xf]
        %v465 = vld [vmem:[%s3 + $0x18] sm:$0xf]
        %v466 = vld [vmem:[%s3 + $0x1c] sm:$0xf]
        %v467 = vpack.c.bf16 %v452, %v451
        %v468 = vpack.c.bf16 %v454, %v453
        %v469 = vpack.c.bf16 %v456, %v455
        %v470 = vpack.c.bf16 %v458, %v457
        %v471 = vld [vmem:[%s4] sm:$0xff]
        %v472 = vld [vmem:[%s4 + $0x8] sm:$0xff]
        %v473 = vld [vmem:[%s4 + $0x10] sm:$0xff]
        %v474 = vld [vmem:[%s4 + $0x18] sm:$0xff]
        %v475 = vld [vmem:[%s4 + $0x20] sm:$0xff]
        %v476 = vld [vmem:[%s4 + $0x28] sm:$0xff]
        %v477 = vld [vmem:[%s4 + $0x30] sm:$0xff]
        %v478 = vld [vmem:[%s4 + $0x38] sm:$0xff]
        %480 = vset.pattern.permute.xlu0 0
        %481 = vperm.xlu0 %480, %v471
        %v482 = vpop.permute.xlu0 %481
        %485 = vset.pattern.permute.xlu0 0
        %486 = vperm.xlu0 %485, %v472
        %v487 = vpop.permute.xlu0 %486
        %490 = vset.pattern.permute.xlu0 0
        %491 = vperm.xlu0 %490, %v473
        %v492 = vpop.permute.xlu0 %491
        %495 = vset.pattern.permute.xlu0 0
        %496 = vperm.xlu0 %495, %v474
        %v497 = vpop.permute.xlu0 %496
        %500 = vset.pattern.permute.xlu0 0
        %501 = vperm.xlu0 %500, %v475
        %v502 = vpop.permute.xlu0 %501
        %505 = vset.pattern.permute.xlu0 0
        %506 = vperm.xlu0 %505, %v476
        %v507 = vpop.permute.xlu0 %506
        %510 = vset.pattern.permute.xlu0 0
        %511 = vperm.xlu0 %510, %v477
        %v512 = vpop.permute.xlu0 %511
        %515 = vset.pattern.permute.xlu0 0
        %516 = vperm.xlu0 %515, %v478
        %v517 = vpop.permute.xlu0 %516
        %v527 = vunpack.c.l.b16 %v459
        %v528 = vunpack.c.l.b16 %v460
        %v529 = vunpack.c.l.b16 %v461
        %v530 = vunpack.c.l.b16 %v462
        %v531 = vunpack.c.l.b16 %v463
        %v532 = vunpack.c.l.b16 %v464
        %v533 = vunpack.c.l.b16 %v465
        %v534 = vunpack.c.l.b16 %v466
        %v535 = vpack.c.b16 %v528, %v527
        %v536 = vpack.c.b16 %v530, %v529
        %v537 = vpack.c.b16 %v532, %v531
        %v538 = vpack.c.b16 %v534, %v533
        %vm539 = vcmask 523264
        %v541 = vsel %vm539, %v535, 0
        %v544 = vsel %vm539, %v536, 0
        %v547 = vsel %vm539, %v537, 0
        %v550 = vsel %vm539, %v538, 0
        %552 = vmatpush.bf16.msra.mxu0 0
        %553 = vmatpush.bf16.msra.mxu0 0
        %554 = vmatpush.bf16.msra.mxu0 0
        %555 = vmatpush.bf16.msra.mxu0 0
        %556 = vmatpush.bf16.msra.mxu0 %v470
        %557 = vmatpush.bf16.msra.mxu0 %v469
        %558 = vmatpush.bf16.msra.mxu0 %v468
        %559 = vmatpush.bf16.msra.mxu0 %v467
        %560 = vmatmul.bf16.gmra.mxu0 %v541
        %v561 = vpop.f32.mrf.mxu0
        %v562 = vadd.f32 %v482, %v561
        %v563 = vpop.f32.mrf.mxu0
        %v564 = vadd.f32 %v487, %v563
        %565 = vmatmul.bf16.gmra.mxu0 %v544
        %v566 = vpop.f32.mrf.mxu0
        %v567 = vadd.f32 %v492, %v566
        %v568 = vpop.f32.mrf.mxu0
        %v569 = vadd.f32 %v497, %v568
        %570 = vmatmul.bf16.gmra.mxu0 %v547
        %v571 = vpop.f32.mrf.mxu0
        %v572 = vadd.f32 %v502, %v571
        %v573 = vpop.f32.mrf.mxu0
        %v574 = vadd.f32 %v507, %v573
        %575 = vmatmul.bf16.gmra.mxu0 %v550
        %v576 = vpop.f32.mrf.mxu0
        %v577 = vadd.f32 %v512, %v576
        %v578 = vpop.f32.mrf.mxu0
        %v579 = vadd.f32 %v517, %v578
        %580 = vdwg.mxu0
        %v581 = vmax.f32 %v562, 0.0
        %v582 = vmax.f32 %v564, 0.0
        %v583 = vmax.f32 %v567, 0.0
        %v584 = vmax.f32 %v569, 0.0
        %v585 = vmax.f32 %v572, 0.0
        %v586 = vmax.f32 %v574, 0.0
        %v587 = vmax.f32 %v577, 0.0
        %v588 = vmax.f32 %v579, 0.0
        %v589 = vld [vmem:[%s5] sm:$0xff]
        %v590 = vld [vmem:[%s5 + $0x8] sm:$0xff]
        %v591 = vld [vmem:[%s5 + $0x10] sm:$0xff]
        %v592 = vld [vmem:[%s5 + $0x18] sm:$0xff]
        %v593 = vld [vmem:[%s5 + $0x20] sm:$0xff]
        %v594 = vld [vmem:[%s5 + $0x28] sm:$0xff]
        %v595 = vld [vmem:[%s5 + $0x30] sm:$0xff]
        %v596 = vld [vmem:[%s5 + $0x38] sm:$0xff]
        %598 = vset.pattern.permute.xlu0 0
        %599 = vperm.xlu0 %598, %v589
        %v600 = vpop.permute.xlu0 %599
        %603 = vset.pattern.permute.xlu0 0
        %604 = vperm.xlu0 %603, %v590
        %v605 = vpop.permute.xlu0 %604
        %608 = vset.pattern.permute.xlu0 0
        %609 = vperm.xlu0 %608, %v591
        %v610 = vpop.permute.xlu0 %609
        %613 = vset.pattern.permute.xlu0 0
        %614 = vperm.xlu0 %613, %v592
        %v615 = vpop.permute.xlu0 %614
        %618 = vset.pattern.permute.xlu0 0
        %619 = vperm.xlu0 %618, %v593
        %v620 = vpop.permute.xlu0 %619
        %623 = vset.pattern.permute.xlu0 0
        %624 = vperm.xlu0 %623, %v594
        %v625 = vpop.permute.xlu0 %624
        %628 = vset.pattern.permute.xlu0 0
        %629 = vperm.xlu0 %628, %v595
        %v630 = vpop.permute.xlu0 %629
        %633 = vset.pattern.permute.xlu0 0
        %634 = vperm.xlu0 %633, %v596
        %v635 = vpop.permute.xlu0 %634
        %v637 = vmul.f32 %v581, %v600
        %v638 = vmul.f32 %v582, %v605
        %v639 = vmul.f32 %v583, %v610
        %v640 = vmul.f32 %v584, %v615
        %v641 = vmul.f32 %v585, %v620
        %v642 = vmul.f32 %v586, %v625
        %v643 = vmul.f32 %v587, %v630
        %v644 = vmul.f32 %v588, %v635
        %v645 = vadd.f32 %v637, %v638
        %v646 = vadd.f32 %v645, %v639
        %v647 = vadd.f32 %v646, %v640
        %v648 = vadd.f32 %v647, %v641
        %v649 = vadd.f32 %v648, %v642
        %v650 = vadd.f32 %v649, %v643
        %v651 = vadd.f32 %v650, %v644
        %v652 = vrot.slane %v651, 4
        %v653 = vadd.f32 %v651, %v652
        %v654 = vrot.slane %v653, 2
        %v655 = vadd.f32 %v653, %v654
        %v656 = vrot.slane %v655, 1
        %v657 = vadd.f32 %v655, %v656
        %v658 = vld [vmem:[#allocation2] sm:$0x1]
        %660 = vset.pattern.permute.xlu0 0
        %661 = vperm.xlu0 %660, %v658
        %v662 = vpop.permute.xlu0 %661
        %v664 = vperm.slane %v662, 0
        %v665 = vadd.f32 %v657, %v664
        %666 = vst [vmem:[%s323] sm:$0x1] %v665
        %p667 = scmp.lt.s32.totalorder %s20, 1
        %s668 = scalar_select %p667, %s20, 1
        %s669 = scalar_lea.vmem %s7, %s668
        // Predicated region
        $region90: #{mlp_regressor_forward.1} parent=84 // pred_check
          %p670 = pneg %p190
        $region91: #{mlp_regressor_forward.1} parent=84 // pred_check_branch
          %672 = sbr.rel (%p670) target = $region93
        $region92: #{mlp_regressor_forward.1} parent=84 // pred_region
          _
        $region93: #{mlp_regressor_forward.1} parent=84 // pred_fallthru
          _
      $region85: #{mlp_regressor_forward.1} parent=5 // pred_fallthru
        _
      %p673 = scmp.le.s32.totalorder 2, %s15
      // Predicated region
      $region94: #{mlp_regressor_forward.1} parent=5 // pred_check
        %p674 = pneg %p673
      $region95: #{mlp_regressor_forward.1} parent=5 // pred_check_branch
        %676 = sbr.rel (%p674) target = $region97
      $region96: #{mlp_regressor_forward.1} parent=5 // pred_region
        %s677 = ssub.s32 %s15, 2
        // Predicated region
        $region98: #{mlp_regressor_forward.1} parent=96 // pred_check
          %p678 = pneg %p196
        $region99: #{mlp_regressor_forward.1} parent=96 // pred_check_branch
          %680 = sbr.rel (%p678) target = $region101
        $region100: #{mlp_regressor_forward.1} parent=96 // pred_region
          %p681 = scmp.lt.s32.totalorder %s21, 1
          %s682 = scalar_select %p681, %s21, 1
          %s683 = scalar_lea.vmem %s7, %s682
        $region101: #{mlp_regressor_forward.1} parent=96 // pred_fallthru
          _
      $region97: #{mlp_regressor_forward.1} parent=5 // pred_fallthru
        _
    $region6: #{mlp_regressor_forward.1} parent=1 // loop_footer
      %s19 = sadd.s32 1, %s15
    $region7: #{mlp_regressor_forward.1} parent=1 // loop_footer_branch
      %14 = sbr.rel target = $region3
    $region8: #{mlp_regressor_forward.1} parent=1 // loop_exit
      _

</llo_original>
